<compile_context>
chip_gen: v7x
topology: tpu7x:2x2x1
jax: 0.10.0
libtpu: 0.0.40
codegen_flags: <defaults>
</compile_context>

<pallas_src>
import functools

import jax
import jax.numpy as jnp
from jax.experimental import pallas as pl
from jax.experimental.pallas import tpu as pltpu


# --------------------------------------------------------------------------
# Kernel body
# --------------------------------------------------------------------------
def _llama_mlp_kernel(x_ref, wgu_ref, wd_ref, o_ref, *scratch, ti, nj):
    """One (token-tile, intermediate-tile) grid step.

    gu      = x @ [Wg_j | Wu_j]           (single fused MXU dot, f32 acc)
    h       = SiLU(g) * u                 (f32)
    partial = h @ Wd_j                    (f32)
    acc     = partial            (j == 0)   <- no separate zero-init pass
    acc    += partial            (j  > 0)
    out     = acc                (j == nj-1)
    """
    gu = jnp.dot(x_ref[...], wgu_ref[...], preferred_element_type=jnp.float32)
    g = gu[:, :ti]                       # lane-aligned static slices
    u = gu[:, ti:]
    h = ((g * jax.nn.sigmoid(g)) * u).astype(wd_ref.dtype)
    partial = jnp.dot(h, wd_ref[...], preferred_element_type=jnp.float32)

    if nj == 1:                          # single reduction step: skip the acc
        o_ref[...] = partial.astype(o_ref.dtype)
        return

    acc_ref = scratch[0]
    j = pl.program_id(1)

    @pl.when(j == 0)
    def _():
        acc_ref[...] = partial

    @pl.when(j != 0)
    def _():
        acc_ref[...] += partial

    @pl.when(j == nj - 1)
    def _():
        o_ref[...] = acc_ref[...].astype(o_ref.dtype)


# --------------------------------------------------------------------------
# Device / tiling helpers
# --------------------------------------------------------------------------
def _round_up(x, m):
    return (x + m - 1) // m * m


def _device_caps():
    """Generation-aware VMEM ceiling, tile alignment and token-tile target."""
    try:
        kind = jax.devices()[0].device_kind.lower()
    except Exception:
        kind = ""
    if "v7" in kind:
        # 64 MiB physical per TensorCore -> leave headroom
        return {"gen": 7, "vmem_cap": 56 << 20, "tm_align": 256, "tm_target": 768}
    if "v6" in kind:
        return {"gen": 6, "vmem_cap": 100 << 20, "tm_align": 256, "tm_target": 1024}
    if "v5" in kind:
        # crossover ~240 flop/byte: tm=512 is enough, spend VMEM on ti instead
        return {"gen": 5, "vmem_cap": 100 << 20, "tm_align": 128, "tm_target": 512}
    return {"gen": 0, "vmem_cap": 64 << 20, "tm_align": 128, "tm_target": 512}


def _vmem_bytes(tm, ti, H, cbytes, obytes, x_buf, out_buf):
    """VMEM footprint estimate, including the dot temporaries."""
    return (x_buf * tm * H * cbytes             # x tile
            + 2 * H * (2 * ti) * cbytes         # fused [Wg|Wu] slab (double-buf)
            + 2 * ti * H * cbytes               # Wd slab (double-buf)
            + out_buf * tm * H * obytes         # output tile
            + tm * H * 4                        # resident f32 accumulator
            + tm * (2 * ti) * 4                 # first-dot f32 result
            + tm * ti * 4                       # SiLU(g)*u intermediate (f32)
            + tm * ti * cbytes)                 # h cast back to compute dtype


def _select_ti(H, I, cbytes, caps, ti=None):
    """Intermediate tile: largest lane-aligned size whose slabs fit VMEM."""
    if ti is not None:
        assert ti % 128 == 0, "ti must be a multiple of 128 (lane width)"
        return ti
    gen, cap = caps["gen"], caps["vmem_cap"]
    tm_probe = caps["tm_target"]
    x_buf = out_buf = 1 if gen >= 7 else 2
    # candidates: allow non-divisors of I (weights get zero-padded), but keep
    # the padding waste under ~10%.
    cands = [c for c in (1024, 512, 256, 128)
             if c <= I and _round_up(I, c) * 10 <= I * 11]
    if not cands:
        return _round_up(I, 128)            # tiny intermediate dim
    for c in cands:                          # largest first
        if _vmem_bytes(tm_probe, c, H, cbytes, 4, x_buf, out_buf) <= cap:
            return c
    return cands[-1]


def _select_tm(M, H, ti, cbytes, obytes, caps, tm=None):
    """Per-call token tile. Returns (tm, want_single_buffer_x_out)."""
    gen, align, cap = caps["gen"], caps["tm_align"], caps["vmem_cap"]
    want_single = gen >= 7                   # single-buffer x/out on v7x
    x_buf = out_buf = 1 if want_single else 2
    if tm is None:
        target = caps["tm_target"]
        if M <= 256:
            tm = _round_up(max(M, 8), 16)    # decode / tiny: pad to 16 rows
        else:
            if gen >= 7:
                # keep nm >= 2 so both v7x TensorCores get token tiles
                target = min(target, _round_up(-(-M // 2), align))
            tm = min(_round_up(M, align), _round_up(target, align))
            # shrink until the budget (incl. temporaries) fits this generation
            while tm > align and _vmem_bytes(tm, ti, H, cbytes, obytes,
                                             x_buf, out_buf) > cap:
                tm -= align
    assert tm % 8 == 0 and tm >= 8
    return tm, want_single


def _make_spec(shape, index_map, want_single):
    """BlockSpec, optionally single-buffered. Returns (spec, buffer_count)."""
    if want_single:
        try:
            return (pl.BlockSpec(shape, index_map,
                                 pipeline_mode=pl.Buffered(1)), 1)
        except TypeError:        # pipeline_mode not supported in this version
            pass
    return pl.BlockSpec(shape, index_map), 2


# --------------------------------------------------------------------------
# Weight preparation (run ONCE per set of weights, not per forward call)
# --------------------------------------------------------------------------
def prepare_llama_mlp(w_gate, w_up, w_down, *, ti=None,
                      compute_dtype=jnp.bfloat16):
    """Fuse gate/up into one [H, 2*Ip] slab (per-tile interleaved), cast to the
    compute dtype, and zero-pad the intermediate dim to a multiple of ti."""
    H, I = w_gate.shape
    assert w_up.shape == (H, I) and w_down.shape == (I, H)
    caps = _device_caps()
    cd = jnp.dtype(compute_dtype)
    ti = _select_ti(H, I, cd.itemsize, caps, ti=ti)
    Ip = _round_up(I, ti)
    nj = Ip // ti

    wg = w_gate.astype(cd)
    wu = w_up.astype(cd)
    wd = w_down.astype(cd)
    if Ip != I:                               # zero-pad: exact no-op on output
        wg = jnp.pad(wg, ((0, 0), (0, Ip - I)))
        wu = jnp.pad(wu, ((0, 0), (0, Ip - I)))
        wd = jnp.pad(wd, ((0, Ip - I), (0, 0)))

    # Interleave per reduction tile so block j of [H, 2*ti] is [Wg_j | Wu_j].
    w_gu = jnp.concatenate([wg.reshape(H, nj, ti), wu.reshape(H, nj, ti)],
                           axis=2).reshape(H, 2 * Ip)
    return {"w_gu": w_gu, "w_dn": wd, "H": H, "I": I, "Ip": Ip,
            "ti": ti, "nj": nj, "compute_dtype": cd}


# --------------------------------------------------------------------------
# Forward
# --------------------------------------------------------------------------
def llama_mlp_apply(params, x, *, tm=None):
    """x: [B, S, H] -> [B, S, H] using prepared weights."""
    B, S, H = x.shape
    assert H == params["H"], "hidden_size mismatch"
    cd = params["compute_dtype"]
    ti, nj, Ip = params["ti"], params["nj"], params["Ip"]
    out_dtype = x.dtype
    caps = _device_caps()
    cbytes = cd.itemsize
    obytes = jnp.dtype(out_dtype).itemsize

    M = B * S
    tm, want_single = _select_tm(M, H, ti, cbytes, obytes, caps, tm=tm)
    Mp = _round_up(M, tm)
    nm = Mp // tm

    x2d = x.reshape(M, H).astype(cd)
    if Mp != M:                               # ragged token count -> zero-pad
        x2d = jnp.pad(x2d, ((0, Mp - M), (0, 0)))

    x_spec, xb = _make_spec((tm, H), lambda m, j: (m, 0), want_single)
    out_spec, ob = _make_spec((tm, H), lambda m, j: (m, 0), want_single)

    vmem_needed = _vmem_bytes(tm, ti, H, cbytes, obytes, xb, ob)
    vmem_limit = min(caps["vmem_cap"],
                     max(32 << 20, int(vmem_needed * 1.15) + (2 << 20)))

    cost = pl.CostEstimate(
        flops=6 * Mp * H * Ip,
        transcendentals=Mp * Ip,
        # weights are re-streamed once per token tile (nm passes)
        bytes_accessed=(Mp * H * cbytes + nm * 3 * H * Ip * cbytes
                        + Mp * H * obytes),
    )

    scratch = [pltpu.VMEM((tm, H), jnp.float32)] if nj > 1 else []

    out2d = pl.pallas_call(
        functools.partial(_llama_mlp_kernel, ti=ti, nj=nj),
        out_shape=jax.ShapeDtypeStruct((Mp, H), out_dtype),
        grid_spec=pltpu.PrefetchScalarGridSpec(
            num_scalar_prefetch=0,
            grid=(nm, nj),
            in_specs=[
                x_spec,                                          # x tile
                pl.BlockSpec((H, 2 * ti), lambda m, j: (0, j)),  # [Wg|Wu] slab
                pl.BlockSpec((ti, H), lambda m, j: (j, 0)),      # Wd slab
            ],
            out_specs=out_spec,
            scratch_shapes=scratch,
        ),
        compiler_params=pltpu.CompilerParams(
            dimension_semantics=("parallel", "arbitrary"),
            vmem_limit_bytes=int(vmem_limit),
        ),
        cost_estimate=cost,
    )(x2d, params["w_gu"], params["w_dn"])

    if Mp != M:
        out2d = out2d[:M]
    return out2d.reshape(B, S, H)


def llama_mlp(x, w_gate, w_up, w_down, *, tm=None, ti=None,
              compute_dtype=jnp.bfloat16):
    """Convenience one-shot path (prep + apply). For repeated forwards, call
    prepare_llama_mlp() once and reuse the params with llama_mlp_apply()."""
    params = prepare_llama_mlp(w_gate, w_up, w_down, ti=ti,
                               compute_dtype=compute_dtype)
    return llama_mlp_apply(params, x, tm=tm)


# --------------------------------------------------------------------------
# Self-test
# --------------------------------------------------------------------------
if __name__ == "__main__":
    # Small, TPU-tile-friendly config (toy-scale analogue of LlamaConfig).
    batch, seq = 2, 8
    hidden_size = 256
    intermediate_size = 512

    key = jax.random.PRNGKey(0)
    kx, kg, ku, kd = jax.random.split(key, 4)

    x = jax.random.normal(kx, (batch, seq, hidden_size), dtype=jnp.float32)
    # nn.Linear-like weights (no bias: mlp_bias=False), stored [in, out].
    w_gate = jax.random.normal(kg, (hidden_size, intermediate_size),
                               dtype=jnp.float32) / jnp.sqrt(hidden_size)
    w_up = jax.random.normal(ku, (hidden_size, intermediate_size),
                             dtype=jnp.float32) / jnp.sqrt(hidden_size)
    w_down = jax.random.normal(kd, (intermediate_size, hidden_size),
                               dtype=jnp.float32) / jnp.sqrt(intermediate_size)

    # --- default (bf16 MXU) path: weights prepared once, reused per call ---
    params = prepare_llama_mlp(w_gate, w_up, w_down)
    params = jax.tree_util.tree_map(
        lambda a: jax.block_until_ready(a) if isinstance(a, jax.Array) else a,
        params)
    out = jax.block_until_ready(llama_mlp_apply(params, x))
    assert out.shape == (batch, seq, hidden_size)

    # Reference at matching precision (bf16 matmuls, f32 accumulation).
    cd = jnp.bfloat16
    x2 = x.reshape(-1, hidden_size).astype(cd)
    g = jnp.dot(x2, w_gate.astype(cd), preferred_element_type=jnp.float32)
    u = jnp.dot(x2, w_up.astype(cd), preferred_element_type=jnp.float32)
    h = (g * jax.nn.sigmoid(g)) * u
    ref_bf16 = jnp.dot(h.astype(cd), w_down.astype(cd),
                       preferred_element_type=jnp.float32)
    ref_bf16 = ref_bf16.reshape(batch, seq, hidden_size).astype(x.dtype)
    assert jnp.allclose(out, ref_bf16, atol=2e-2, rtol=2e-2), \
        float(jnp.max(jnp.abs(out - ref_bf16)))

    # --- full-precision path against the exact f32 reference ---
    out_f32 = jax.block_until_ready(
        llama_mlp(x, w_gate, w_up, w_down, compute_dtype=jnp.float32))
    g32 = x @ w_gate
    ref_f32 = ((g32 * jax.nn.sigmoid(g32)) * (x @ w_up)) @ w_down
    assert jnp.allclose(out_f32, ref_f32, atol=1e-3, rtol=1e-3)

    print("KERNEL_OK")
</pallas_src>

<mosaic_0001>
module attributes {stable_mosaic.version = 11 : i64} {
  func.func @_llama_mlp_kernel(%arg0: i32, %arg1: i32, %arg2: memref<16x256xbf16, #tpu.memory_space<vmem>>, %arg3: memref<256x1024xbf16, #tpu.memory_space<vmem>>, %arg4: memref<512x256xbf16, #tpu.memory_space<vmem>>, %arg5: memref<16x256xf32, #tpu.memory_space<vmem>>) attributes {dimension_semantics = [#tpu.dimension_semantics<parallel>, #tpu.dimension_semantics<arbitrary>], iteration_bounds = array<i64: 1, 1>, scalar_prefetch = 0 : i64, scratch_operands = 0 : i64, tpu.core_type = #tpu.core_type<tc>, window_params = [{transform_indices = @transform_0, window_bounds = array<i64: 16, 256>}, {transform_indices = @transform_1, window_bounds = array<i64: 256, 1024>}, {transform_indices = @transform_2, window_bounds = array<i64: 512, 256>}, {transform_indices = @transform_3, window_bounds = array<i64: 16, 256>}]} {
    %c0 = arith.constant 0 : index
    %c0_0 = arith.constant 0 : index
    %0 = vector.load %arg2[%c0, %c0_0] : memref<16x256xbf16, #tpu.memory_space<vmem>>, vector<16x256xbf16>
    %c0_1 = arith.constant 0 : index
    %c0_2 = arith.constant 0 : index
    %1 = vector.load %arg3[%c0_1, %c0_2] : memref<256x1024xbf16, #tpu.memory_space<vmem>>, vector<256x1024xbf16>
    %cst = arith.constant dense<0.000000e+00> : vector<16x1024xf32>
    %2 = tpu.matmul %0, %1, %cst {dimension_numbers = #tpu.dot_dimension_numbers<[1], [0], [0], [1], [0, 0, 1, 1], [], []>} : vector<16x256xbf16>, vector<256x1024xbf16>, vector<16x1024xf32> -> vector<16x1024xf32>
    %3 = vector.extract_strided_slice %2 {offsets = [0, 0], sizes = [16, 512], strides = [1, 1]} : vector<16x1024xf32> to vector<16x512xf32>
    %4 = vector.extract_strided_slice %2 {offsets = [0, 512], sizes = [16, 512], strides = [1, 1]} : vector<16x1024xf32> to vector<16x512xf32>
    %5 = arith.negf %3 : vector<16x512xf32>
    %6 = math.exp %5 : vector<16x512xf32>
    %cst_3 = arith.constant 1.000000e+00 : f32
    %7 = vector.broadcast %cst_3 : f32 to vector<16x512xf32>
    %8 = arith.addf %7, %6 : vector<16x512xf32>
    %9 = arith.divf %7, %8 : vector<16x512xf32>
    %10 = arith.mulf %3, %9 : vector<16x512xf32>
    %11 = arith.mulf %10, %4 : vector<16x512xf32>
    %12 = arith.truncf %11 : vector<16x512xf32> to vector<16x512xbf16>
    %c0_4 = arith.constant 0 : index
    %c0_5 = arith.constant 0 : index
    %13 = vector.load %arg4[%c0_4, %c0_5] : memref<512x256xbf16, #tpu.memory_space<vmem>>, vector<512x256xbf16>
    %cst_6 = arith.constant dense<0.000000e+00> : vector<16x256xf32>
    %14 = tpu.matmul %12, %13, %cst_6 {dimension_numbers = #tpu.dot_dimension_numbers<[1], [0], [0], [1], [0, 0, 1, 1], [], []>} : vector<16x512xbf16>, vector<512x256xbf16>, vector<16x256xf32> -> vector<16x256xf32>
    %c0_7 = arith.constant 0 : index
    %c0_8 = arith.constant 0 : index
    %15 = vector.load %arg5[%c0_7, %c0_8] : memref<16x256xf32, #tpu.memory_space<vmem>>, vector<16x256xf32>
    tpu.vector_store %arg5[%c0_7, %c0_8], %14 {strides = array<i32>} : memref<16x256xf32, #tpu.memory_space<vmem>>, vector<16x256xf32>,
    return
  }
  func.func @transform_0(%arg0: i32, %arg1: i32) -> (i32, i32) {
    %c0_i32 = arith.constant 0 : i32
    %c0_i32_0 = arith.constant 0 : i32
    return %arg0, %c0_i32 : i32, i32
  }
  func.func @transform_1(%arg0: i32, %arg1: i32) -> (i32, i32) {
    %c0_i32 = arith.constant 0 : i32
    %c0_i32_0 = arith.constant 0 : i32
    return %c0_i32, %arg1 : i32, i32
  }
  func.func @transform_2(%arg0: i32, %arg1: i32) -> (i32, i32) {
    %c0_i32 = arith.constant 0 : i32
    %c0_i32_0 = arith.constant 0 : i32
    return %arg1, %c0_i32 : i32, i32
  }
  func.func @transform_3(%arg0: i32, %arg1: i32) -> (i32, i32) {
    %c0_i32 = arith.constant 0 : i32
    %c0_i32_0 = arith.constant 0 : i32
    return %arg0, %c0_i32 : i32, i32
  }
}

</mosaic_0001>

<llo_original>
// kernel: tpu_custom_call.1
$region0: #{tpu_custom_call.1}
  #allocation0 [shape = 'u32[]', space=smem, size = 0x4, offset = 0x4, fixed_abs, tag = 'smem constant byte address 0x4 - core index']
  #allocation1 [shape = 'u32[144,128]{1,0:T(1,128)}', space=vmem, size = 0x12000, scoped, tag = 'internal scratch']
  %s0 = inlined_call_operand.hbm [shape: bf16[16,256], index: 0, kind: input, shape index: {}]
  %s1 = inlined_call_operand.hbm [shape: bf16[256,1024], index: 1, kind: input, shape index: {}]
  %s2 = inlined_call_operand.hbm [shape: bf16[512,256], index: 2, kind: input, shape index: {}]
  %s3 = inlined_call_operand.hbm [shape: f32[16,256], index: 3, kind: output, shape index: {}]
  %s4 = sld [smem:[#allocation0]]
  $region34: #{tpu_custom_call.1} parent=0
    _
  %s6 = ssub.s32 1, %s4
  %s7 = scalar_select 0, %s6, %s4
  $region1: #{tpu_custom_call.1} parent=0
    #allocation2 [shape = 'u8[8192]{0}', space=vmem, size = 0x2000, scoped, tag = 'input window, operand 0, single buffered']
    #allocation3 [shape = 's32[1]{0}', space=sflag, size = 0x4, scoped, tag = 'scoped memory for tpu_custom_call.1']
    #allocation4 [shape = 's32[1]{0}', space=sflag, size = 0x4, scoped, tag = 'scoped memory for tpu_custom_call.1']
    #allocation5 [shape = 'u8[524288]{0}', space=vmem, size = 0x80000, scoped, tag = 'input window, operand 1, single buffered']
    #allocation6 [shape = 's32[1]{0}', space=sflag, size = 0x4, scoped, tag = 'scoped memory for tpu_custom_call.1']
    #allocation7 [shape = 'u8[262144]{0}', space=vmem, size = 0x40000, scoped, tag = 'input window, operand 2, single buffered']
    #allocation8 [shape = 'u8[16384]{0}', space=vmem, size = 0x4000, scoped, tag = 'output window, operand 0, single buffered']
    %8 = vsyncpa [#allocation3], 0
    %9 = vsyncpa [#allocation6], 0
    %10 = vsyncpa [#allocation4], 0
    // Predicated region
    $region2: #{tpu_custom_call.1} parent=1 // pred_check
      _
    $region3: #{tpu_custom_call.1} parent=1 // pred_check_branch
      %12 = sbr.rel (0) target = $region5
    $region4: #{tpu_custom_call.1} parent=1 // pred_region
      %s14 = ssub.s32 256, 256
      %15 = vsyncadd [#allocation3], %s14
      %s16 = sshll.u32 [#allocation2], 4
      %s17 = int_to_ptr.vmem [resolvable:$true] %s16
      %22 = dma.hbm_to_vmem [thread:$0]  %s0, 256, %s17, [#allocation3], 128, 128, 8
    $region5: #{tpu_custom_call.1} parent=1 // pred_fallthru
      _
    // Predicated region
    $region6: #{tpu_custom_call.1} parent=1 // pred_check
      _
    $region7: #{tpu_custom_call.1} parent=1 // pred_check_branch
      %24 = sbr.rel (0) target = $region9
    $region8: #{tpu_custom_call.1} parent=1 // pred_region
      %s26 = ssub.s32 16384, 16384
      %27 = vsyncadd [#allocation6], %s26
      %s28 = sshll.u32 [#allocation5], 4
      %s29 = int_to_ptr.vmem [resolvable:$true] %s28
      %34 = dma.hbm_to_vmem [thread:$0]  %s1, 16384, %s29, [#allocation6], 512, 512, 32
    $region9: #{tpu_custom_call.1} parent=1 // pred_fallthru
      _
    // Predicated region
    $region10: #{tpu_custom_call.1} parent=1 // pred_check
      _
    $region11: #{tpu_custom_call.1} parent=1 // pred_check_branch
      %36 = sbr.rel (0) target = $region13
    $region12: #{tpu_custom_call.1} parent=1 // pred_region
      %s38 = ssub.s32 8192, 8192
      %39 = vsyncadd [#allocation6], %s38
      %s40 = sshll.u32 [#allocation7], 4
      %s41 = int_to_ptr.vmem [resolvable:$true] %s40
      %46 = dma.hbm_to_vmem [thread:$0]  %s2, 8192, %s41, [#allocation6], 128, 128, 8
    $region13: #{tpu_custom_call.1} parent=1 // pred_fallthru
      _
    // Predicated region
    $region14: #{tpu_custom_call.1} parent=1 // pred_check
      _
    $region15: #{tpu_custom_call.1} parent=1 // pred_check_branch
      %48 = sbr.rel (0) target = $region17
    $region16: #{tpu_custom_call.1} parent=1 // pred_region
      %49 = dma.done [#allocation3], 256
    $region17: #{tpu_custom_call.1} parent=1 // pred_fallthru
      _
    // Predicated region
    $region18: #{tpu_custom_call.1} parent=1 // pred_check
      _
    $region19: #{tpu_custom_call.1} parent=1 // pred_check_branch
      %51 = sbr.rel (0) target = $region21
    $region20: #{tpu_custom_call.1} parent=1 // pred_region
      %52 = dma.done [#allocation6], 16384
    $region21: #{tpu_custom_call.1} parent=1 // pred_fallthru
      _
    // Predicated region
    $region22: #{tpu_custom_call.1} parent=1 // pred_check
      _
    $region23: #{tpu_custom_call.1} parent=1 // pred_check_branch
      %54 = sbr.rel (0) target = $region25
    $region24: #{tpu_custom_call.1} parent=1 // pred_region
      %55 = dma.done [#allocation6], 8192
    $region25: #{tpu_custom_call.1} parent=1 // pred_fallthru
      _
    %v56 = vld [vmem:[#allocation2] sm:$0xff]
    %v57 = vld [vmem:[#allocation2 + $0x8] sm:$0xff]
    %v58 = vld [vmem:[#allocation5] sm:$0xff]
    %v59 = vld [vmem:[#allocation5 + $0x8] sm:$0xff]
    %v60 = vld [vmem:[#allocation5 + $0x10] sm:$0xff]
    %v61 = vld [vmem:[#allocation5 + $0x18] sm:$0xff]
    %v62 = vld [vmem:[#allocation5 + $0x20] sm:$0xff]
    %v63 = vld [vmem:[#allocation5 + $0x28] sm:$0xff]
    %v64 = vld [vmem:[#allocation5 + $0x30] sm:$0xff]
    %v65 = vld [vmem:[#allocation5 + $0x38] sm:$0xff]
    %v66 = vld [vmem:[#allocation5 + $0x40] sm:$0xff]
    %v67 = vld [vmem:[#allocation5 + $0x48] sm:$0xff]
    %v68 = vld [vmem:[#allocation5 + $0x50] sm:$0xff]
    %v69 = vld [vmem:[#allocation5 + $0x58] sm:$0xff]
    %v70 = vld [vmem:[#allocation5 + $0x60] sm:$0xff]
    %v71 = vld [vmem:[#allocation5 + $0x68] sm:$0xff]
    %v72 = vld [vmem:[#allocation5 + $0x70] sm:$0xff]
    %v73 = vld [vmem:[#allocation5 + $0x78] sm:$0xff]
    %v74 = vld [vmem:[#allocation5 + $0x80] sm:$0xff]
    %v75 = vld [vmem:[#allocation5 + $0x88] sm:$0xff]
    %v76 = vld [vmem:[#allocation5 + $0x90] sm:$0xff]
    %v77 = vld [vmem:[#allocation5 + $0x98] sm:$0xff]
    %v78 = vld [vmem:[#allocation5 + $0xa0] sm:$0xff]
    %v79 = vld [vmem:[#allocation5 + $0xa8] sm:$0xff]
    %v80 = vld [vmem:[#allocation5 + $0xb0] sm:$0xff]
    %v81 = vld [vmem:[#allocation5 + $0xb8] sm:$0xff]
    %v82 = vld [vmem:[#allocation5 + $0xc0] sm:$0xff]
    %v83 = vld [vmem:[#allocation5 + $0xc8] sm:$0xff]
    %v84 = vld [vmem:[#allocation5 + $0xd0] sm:$0xff]
    %v85 = vld [vmem:[#allocation5 + $0xd8] sm:$0xff]
    %v86 = vld [vmem:[#allocation5 + $0xe0] sm:$0xff]
    %v87 = vld [vmem:[#allocation5 + $0xe8] sm:$0xff]
    %v88 = vld [vmem:[#allocation5 + $0xf0] sm:$0xff]
    %v89 = vld [vmem:[#allocation5 + $0xf8] sm:$0xff]
    %v90 = vld [vmem:[#allocation5 + $0x100] sm:$0xff]
    %v91 = vld [vmem:[#allocation5 + $0x108] sm:$0xff]
    %v92 = vld [vmem:[#allocation5 + $0x110] sm:$0xff]
    %v93 = vld [vmem:[#allocation5 + $0x118] sm:$0xff]
    %v94 = vld [vmem:[#allocation5 + $0x120] sm:$0xff]
    %v95 = vld [vmem:[#allocation5 + $0x128] sm:$0xff]
    %v96 = vld [vmem:[#allocation5 + $0x130] sm:$0xff]
    %v97 = vld [vmem:[#allocation5 + $0x138] sm:$0xff]
    %v98 = vld [vmem:[#allocation5 + $0x140] sm:$0xff]
    %v99 = vld [vmem:[#allocation5 + $0x148] sm:$0xff]
    %v100 = vld [vmem:[#allocation5 + $0x150] sm:$0xff]
    %v101 = vld [vmem:[#allocation5 + $0x158] sm:$0xff]
    %v102 = vld [vmem:[#allocation5 + $0x160] sm:$0xff]
    %v103 = vld [vmem:[#allocation5 + $0x168] sm:$0xff]
    %v104 = vld [vmem:[#allocation5 + $0x170] sm:$0xff]
    %v105 = vld [vmem:[#allocation5 + $0x178] sm:$0xff]
    %v106 = vld [vmem:[#allocation5 + $0x180] sm:$0xff]
    %v107 = vld [vmem:[#allocation5 + $0x188] sm:$0xff]
    %v108 = vld [vmem:[#allocation5 + $0x190] sm:$0xff]
    %v109 = vld [vmem:[#allocation5 + $0x198] sm:$0xff]
    %v110 = vld [vmem:[#allocation5 + $0x1a0] sm:$0xff]
    %v111 = vld [vmem:[#allocation5 + $0x1a8] sm:$0xff]
    %v112 = vld [vmem:[#allocation5 + $0x1b0] sm:$0xff]
    %v113 = vld [vmem:[#allocation5 + $0x1b8] sm:$0xff]
    %v114 = vld [vmem:[#allocation5 + $0x1c0] sm:$0xff]
    %v115 = vld [vmem:[#allocation5 + $0x1c8] sm:$0xff]
    %v116 = vld [vmem:[#allocation5 + $0x1d0] sm:$0xff]
    %v117 = vld [vmem:[#allocation5 + $0x1d8] sm:$0xff]
    %v118 = vld [vmem:[#allocation5 + $0x1e0] sm:$0xff]
    %v119 = vld [vmem:[#allocation5 + $0x1e8] sm:$0xff]
    %v120 = vld [vmem:[#allocation5 + $0x1f0] sm:$0xff]
    %v121 = vld [vmem:[#allocation5 + $0x1f8] sm:$0xff]
    %v122 = vld [vmem:[#allocation5 + $0x200] sm:$0xff]
    %v123 = vld [vmem:[#allocation5 + $0x208] sm:$0xff]
    %v124 = vld [vmem:[#allocation5 + $0x210] sm:$0xff]
    %v125 = vld [vmem:[#allocation5 + $0x218] sm:$0xff]
    %v126 = vld [vmem:[#allocation5 + $0x220] sm:$0xff]
    %v127 = vld [vmem:[#allocation5 + $0x228] sm:$0xff]
    %v128 = vld [vmem:[#allocation5 + $0x230] sm:$0xff]
    %v129 = vld [vmem:[#allocation5 + $0x238] sm:$0xff]
    %v130 = vld [vmem:[#allocation5 + $0x240] sm:$0xff]
    %v131 = vld [vmem:[#allocation5 + $0x248] sm:$0xff]
    %v132 = vld [vmem:[#allocation5 + $0x250] sm:$0xff]
    %v133 = vld [vmem:[#allocation5 + $0x258] sm:$0xff]
    %v134 = vld [vmem:[#allocation5 + $0x260] sm:$0xff]
    %v135 = vld [vmem:[#allocation5 + $0x268] sm:$0xff]
    %v136 = vld [vmem:[#allocation5 + $0x270] sm:$0xff]
    %v137 = vld [vmem:[#allocation5 + $0x278] sm:$0xff]
    %v138 = vld [vmem:[#allocation5 + $0x280] sm:$0xff]
    %v139 = vld [vmem:[#allocation5 + $0x288] sm:$0xff]
    %v140 = vld [vmem:[#allocation5 + $0x290] sm:$0xff]
    %v141 = vld [vmem:[#allocation5 + $0x298] sm:$0xff]
    %v142 = vld [vmem:[#allocation5 + $0x2a0] sm:$0xff]
    %v143 = vld [vmem:[#allocation5 + $0x2a8] sm:$0xff]
    %v144 = vld [vmem:[#allocation5 + $0x2b0] sm:$0xff]
    %v145 = vld [vmem:[#allocation5 + $0x2b8] sm:$0xff]
    %v146 = vld [vmem:[#allocation5 + $0x2c0] sm:$0xff]
    %v147 = vld [vmem:[#allocation5 + $0x2c8] sm:$0xff]
    %v148 = vld [vmem:[#allocation5 + $0x2d0] sm:$0xff]
    %v149 = vld [vmem:[#allocation5 + $0x2d8] sm:$0xff]
    %v150 = vld [vmem:[#allocation5 + $0x2e0] sm:$0xff]
    %v151 = vld [vmem:[#allocation5 + $0x2e8] sm:$0xff]
    %v152 = vld [vmem:[#allocation5 + $0x2f0] sm:$0xff]
    %v153 = vld [vmem:[#allocation5 + $0x2f8] sm:$0xff]
    %v154 = vld [vmem:[#allocation5 + $0x300] sm:$0xff]
    %v155 = vld [vmem:[#allocation5 + $0x308] sm:$0xff]
    %v156 = vld [vmem:[#allocation5 + $0x310] sm:$0xff]
    %v157 = vld [vmem:[#allocation5 + $0x318] sm:$0xff]
    %v158 = vld [vmem:[#allocation5 + $0x320] sm:$0xff]
    %v159 = vld [vmem:[#allocation5 + $0x328] sm:$0xff]
    %v160 = vld [vmem:[#allocation5 + $0x330] sm:$0xff]
    %v161 = vld [vmem:[#allocation5 + $0x338] sm:$0xff]
    %v162 = vld [vmem:[#allocation5 + $0x340] sm:$0xff]
    %v163 = vld [vmem:[#allocation5 + $0x348] sm:$0xff]
    %v164 = vld [vmem:[#allocation5 + $0x350] sm:$0xff]
    %v165 = vld [vmem:[#allocation5 + $0x358] sm:$0xff]
    %v166 = vld [vmem:[#allocation5 + $0x360] sm:$0xff]
    %v167 = vld [vmem:[#allocation5 + $0x368] sm:$0xff]
    %v168 = vld [vmem:[#allocation5 + $0x370] sm:$0xff]
    %v169 = vld [vmem:[#allocation5 + $0x378] sm:$0xff]
    %v170 = vld [vmem:[#allocation5 + $0x380] sm:$0xff]
    %v171 = vld [vmem:[#allocation5 + $0x388] sm:$0xff]
    %v172 = vld [vmem:[#allocation5 + $0x390] sm:$0xff]
    %v173 = vld [vmem:[#allocation5 + $0x398] sm:$0xff]
    %v174 = vld [vmem:[#allocation5 + $0x3a0] sm:$0xff]
    %v175 = vld [vmem:[#allocation5 + $0x3a8] sm:$0xff]
    %v176 = vld [vmem:[#allocation5 + $0x3b0] sm:$0xff]
    %v177 = vld [vmem:[#allocation5 + $0x3b8] sm:$0xff]
    %v178 = vld [vmem:[#allocation5 + $0x3c0] sm:$0xff]
    %v179 = vld [vmem:[#allocation5 + $0x3c8] sm:$0xff]
    %v180 = vld [vmem:[#allocation5 + $0x3d0] sm:$0xff]
    %v181 = vld [vmem:[#allocation5 + $0x3d8] sm:$0xff]
    %v182 = vld [vmem:[#allocation5 + $0x3e0] sm:$0xff]
    %v183 = vld [vmem:[#allocation5 + $0x3e8] sm:$0xff]
    %v184 = vld [vmem:[#allocation5 + $0x3f0] sm:$0xff]
    %v185 = vld [vmem:[#allocation5 + $0x3f8] sm:$0xff]
    %v188 = vunpack.c.l.b16 %v56
    %v189 = vunpack.c.h.b16 %v56
    %v190 = vunpack.c.l.b16 %v57
    %v191 = vunpack.c.h.b16 %v57
    %v192 = vpack.c.b16 %v190, %v188
    %v193 = vpack.c.b16 %v191, %v189
    %v324 = vunpack.c.l.b16 %v58
    %v325 = vunpack.c.h.b16 %v58
    %v326 = vunpack.c.l.b16 %v59
    %v327 = vunpack.c.h.b16 %v59
    %v328 = vunpack.c.l.b16 %v60
    %v329 = vunpack.c.h.b16 %v60
    %v330 = vunpack.c.l.b16 %v61
    %v331 = vunpack.c.h.b16 %v61
    %v332 = vunpack.c.l.b16 %v62
    %v333 = vunpack.c.h.b16 %v62
    %v334 = vunpack.c.l.b16 %v63
    %v335 = vunpack.c.h.b16 %v63
    %v336 = vunpack.c.l.b16 %v64
    %v337 = vunpack.c.h.b16 %v64
    %v338 = vunpack.c.l.b16 %v65
    %v339 = vunpack.c.h.b16 %v65
    %v340 = vunpack.c.l.b16 %v66
    %v341 = vunpack.c.h.b16 %v66
    %v342 = vunpack.c.l.b16 %v67
    %v343 = vunpack.c.h.b16 %v67
    %v344 = vunpack.c.l.b16 %v68
    %v345 = vunpack.c.h.b16 %v68
    %v346 = vunpack.c.l.b16 %v69
    %v347 = vunpack.c.h.b16 %v69
    %v348 = vunpack.c.l.b16 %v70
    %v349 = vunpack.c.h.b16 %v70
    %v350 = vunpack.c.l.b16 %v71
    %v351 = vunpack.c.h.b16 %v71
    %v352 = vunpack.c.l.b16 %v72
    %v353 = vunpack.c.h.b16 %v72
    %v354 = vunpack.c.l.b16 %v73
    %v355 = vunpack.c.h.b16 %v73
    %v356 = vunpack.c.l.b16 %v74
    %v357 = vunpack.c.h.b16 %v74
    %v358 = vunpack.c.l.b16 %v75
    %v359 = vunpack.c.h.b16 %v75
    %v360 = vunpack.c.l.b16 %v76
    %v361 = vunpack.c.h.b16 %v76
    %v362 = vunpack.c.l.b16 %v77
    %v363 = vunpack.c.h.b16 %v77
    %v364 = vunpack.c.l.b16 %v78
    %v365 = vunpack.c.h.b16 %v78
    %v366 = vunpack.c.l.b16 %v79
    %v367 = vunpack.c.h.b16 %v79
    %v368 = vunpack.c.l.b16 %v80
    %v369 = vunpack.c.h.b16 %v80
    %v370 = vunpack.c.l.b16 %v81
    %v371 = vunpack.c.h.b16 %v81
    %v372 = vunpack.c.l.b16 %v82
    %v373 = vunpack.c.h.b16 %v82
    %v374 = vunpack.c.l.b16 %v83
    %v375 = vunpack.c.h.b16 %v83
    %v376 = vunpack.c.l.b16 %v84
    %v377 = vunpack.c.h.b16 %v84
    %v378 = vunpack.c.l.b16 %v85
    %v379 = vunpack.c.h.b16 %v85
    %v380 = vunpack.c.l.b16 %v86
    %v381 = vunpack.c.h.b16 %v86
    %v382 = vunpack.c.l.b16 %v87
    %v383 = vunpack.c.h.b16 %v87
    %v384 = vunpack.c.l.b16 %v88
    %v385 = vunpack.c.h.b16 %v88
    %v386 = vunpack.c.l.b16 %v89
    %v387 = vunpack.c.h.b16 %v89
    %v388 = vunpack.c.l.b16 %v90
    %v389 = vunpack.c.h.b16 %v90
    %v390 = vunpack.c.l.b16 %v91
    %v391 = vunpack.c.h.b16 %v91
    %v392 = vunpack.c.l.b16 %v92
    %v393 = vunpack.c.h.b16 %v92
    %v394 = vunpack.c.l.b16 %v93
    %v395 = vunpack.c.h.b16 %v93
    %v396 = vunpack.c.l.b16 %v94
    %v397 = vunpack.c.h.b16 %v94
    %v398 = vunpack.c.l.b16 %v95
    %v399 = vunpack.c.h.b16 %v95
    %v400 = vunpack.c.l.b16 %v96
    %v401 = vunpack.c.h.b16 %v96
    %v402 = vunpack.c.l.b16 %v97
    %v403 = vunpack.c.h.b16 %v97
    %v404 = vunpack.c.l.b16 %v98
    %v405 = vunpack.c.h.b16 %v98
    %v406 = vunpack.c.l.b16 %v99
    %v407 = vunpack.c.h.b16 %v99
    %v408 = vunpack.c.l.b16 %v100
    %v409 = vunpack.c.h.b16 %v100
    %v410 = vunpack.c.l.b16 %v101
    %v411 = vunpack.c.h.b16 %v101
    %v412 = vunpack.c.l.b16 %v102
    %v413 = vunpack.c.h.b16 %v102
    %v414 = vunpack.c.l.b16 %v103
    %v415 = vunpack.c.h.b16 %v103
    %v416 = vunpack.c.l.b16 %v104
    %v417 = vunpack.c.h.b16 %v104
    %v418 = vunpack.c.l.b16 %v105
    %v419 = vunpack.c.h.b16 %v105
    %v420 = vunpack.c.l.b16 %v106
    %v421 = vunpack.c.h.b16 %v106
    %v422 = vunpack.c.l.b16 %v107
    %v423 = vunpack.c.h.b16 %v107
    %v424 = vunpack.c.l.b16 %v108
    %v425 = vunpack.c.h.b16 %v108
    %v426 = vunpack.c.l.b16 %v109
    %v427 = vunpack.c.h.b16 %v109
    %v428 = vunpack.c.l.b16 %v110
    %v429 = vunpack.c.h.b16 %v110
    %v430 = vunpack.c.l.b16 %v111
    %v431 = vunpack.c.h.b16 %v111
    %v432 = vunpack.c.l.b16 %v112
    %v433 = vunpack.c.h.b16 %v112
    %v434 = vunpack.c.l.b16 %v113
    %v435 = vunpack.c.h.b16 %v113
    %v436 = vunpack.c.l.b16 %v114
    %v437 = vunpack.c.h.b16 %v114
    %v438 = vunpack.c.l.b16 %v115
    %v439 = vunpack.c.h.b16 %v115
    %v440 = vunpack.c.l.b16 %v116
    %v441 = vunpack.c.h.b16 %v116
    %v442 = vunpack.c.l.b16 %v117
    %v443 = vunpack.c.h.b16 %v117
    %v444 = vunpack.c.l.b16 %v118
    %v445 = vunpack.c.h.b16 %v118
    %v446 = vunpack.c.l.b16 %v119
    %v447 = vunpack.c.h.b16 %v119
    %v448 = vunpack.c.l.b16 %v120
    %v449 = vunpack.c.h.b16 %v120
    %v450 = vunpack.c.l.b16 %v121
    %v451 = vunpack.c.h.b16 %v121
    %v452 = vunpack.c.l.b16 %v122
    %v453 = vunpack.c.h.b16 %v122
    %v454 = vunpack.c.l.b16 %v123
    %v455 = vunpack.c.h.b16 %v123
    %v456 = vunpack.c.l.b16 %v124
    %v457 = vunpack.c.h.b16 %v124
    %v458 = vunpack.c.l.b16 %v125
    %v459 = vunpack.c.h.b16 %v125
    %v460 = vunpack.c.l.b16 %v126
    %v461 = vunpack.c.h.b16 %v126
    %v462 = vunpack.c.l.b16 %v127
    %v463 = vunpack.c.h.b16 %v127
    %v464 = vunpack.c.l.b16 %v128
    %v465 = vunpack.c.h.b16 %v128
    %v466 = vunpack.c.l.b16 %v129
    %v467 = vunpack.c.h.b16 %v129
    %v468 = vunpack.c.l.b16 %v130
    %v469 = vunpack.c.h.b16 %v130
    %v470 = vunpack.c.l.b16 %v131
    %v471 = vunpack.c.h.b16 %v131
    %v472 = vunpack.c.l.b16 %v132
    %v473 = vunpack.c.h.b16 %v132
    %v474 = vunpack.c.l.b16 %v133
    %v475 = vunpack.c.h.b16 %v133
    %v476 = vunpack.c.l.b16 %v134
    %v477 = vunpack.c.h.b16 %v134
    %v478 = vunpack.c.l.b16 %v135
    %v479 = vunpack.c.h.b16 %v135
    %v480 = vunpack.c.l.b16 %v136
    %v481 = vunpack.c.h.b16 %v136
    %v482 = vunpack.c.l.b16 %v137
    %v483 = vunpack.c.h.b16 %v137
    %v484 = vunpack.c.l.b16 %v138
    %v485 = vunpack.c.h.b16 %v138
    %v486 = vunpack.c.l.b16 %v139
    %v487 = vunpack.c.h.b16 %v139
    %v488 = vunpack.c.l.b16 %v140
    %v489 = vunpack.c.h.b16 %v140
    %v490 = vunpack.c.l.b16 %v141
    %v491 = vunpack.c.h.b16 %v141
    %v492 = vunpack.c.l.b16 %v142
    %v493 = vunpack.c.h.b16 %v142
    %v494 = vunpack.c.l.b16 %v143
    %v495 = vunpack.c.h.b16 %v143
    %v496 = vunpack.c.l.b16 %v144
    %v497 = vunpack.c.h.b16 %v144
    %v498 = vunpack.c.l.b16 %v145
    %v499 = vunpack.c.h.b16 %v145
    %v500 = vunpack.c.l.b16 %v146
    %v501 = vunpack.c.h.b16 %v146
    %v502 = vunpack.c.l.b16 %v147
    %v503 = vunpack.c.h.b16 %v147
    %v504 = vunpack.c.l.b16 %v148
    %v505 = vunpack.c.h.b16 %v148
    %v506 = vunpack.c.l.b16 %v149
    %v507 = vunpack.c.h.b16 %v149
    %v508 = vunpack.c.l.b16 %v150
    %v509 = vunpack.c.h.b16 %v150
    %v510 = vunpack.c.l.b16 %v151
    %v511 = vunpack.c.h.b16 %v151
    %v512 = vunpack.c.l.b16 %v152
    %v513 = vunpack.c.h.b16 %v152
    %v514 = vunpack.c.l.b16 %v153
    %v515 = vunpack.c.h.b16 %v153
    %v516 = vunpack.c.l.b16 %v154
    %v517 = vunpack.c.h.b16 %v154
    %v518 = vunpack.c.l.b16 %v155
    %v519 = vunpack.c.h.b16 %v155
    %v520 = vunpack.c.l.b16 %v156
    %v521 = vunpack.c.h.b16 %v156
    %v522 = vunpack.c.l.b16 %v157
    %v523 = vunpack.c.h.b16 %v157
    %v524 = vunpack.c.l.b16 %v158
    %v525 = vunpack.c.h.b16 %v158
    %v526 = vunpack.c.l.b16 %v159
    %v527 = vunpack.c.h.b16 %v159
    %v528 = vunpack.c.l.b16 %v160
    %v529 = vunpack.c.h.b16 %v160
    %v530 = vunpack.c.l.b16 %v161
    %v531 = vunpack.c.h.b16 %v161
    %v532 = vunpack.c.l.b16 %v162
    %v533 = vunpack.c.h.b16 %v162
    %v534 = vunpack.c.l.b16 %v163
    %v535 = vunpack.c.h.b16 %v163
    %v536 = vunpack.c.l.b16 %v164
    %v537 = vunpack.c.h.b16 %v164
    %v538 = vunpack.c.l.b16 %v165
    %v539 = vunpack.c.h.b16 %v165
    %v540 = vunpack.c.l.b16 %v166
    %v541 = vunpack.c.h.b16 %v166
    %v542 = vunpack.c.l.b16 %v167
    %v543 = vunpack.c.h.b16 %v167
    %v544 = vunpack.c.l.b16 %v168
    %v545 = vunpack.c.h.b16 %v168
    %v546 = vunpack.c.l.b16 %v169
    %v547 = vunpack.c.h.b16 %v169
    %v548 = vunpack.c.l.b16 %v170
    %v549 = vunpack.c.h.b16 %v170
    %v550 = vunpack.c.l.b16 %v171
    %v551 = vunpack.c.h.b16 %v171
    %v552 = vunpack.c.l.b16 %v172
    %v553 = vunpack.c.h.b16 %v172
    %v554 = vunpack.c.l.b16 %v173
    %v555 = vunpack.c.h.b16 %v173
    %v556 = vunpack.c.l.b16 %v174
    %v557 = vunpack.c.h.b16 %v174
    %v558 = vunpack.c.l.b16 %v175
    %v559 = vunpack.c.h.b16 %v175
    %v560 = vunpack.c.l.b16 %v176
    %v561 = vunpack.c.h.b16 %v176
    %v562 = vunpack.c.l.b16 %v177
    %v563 = vunpack.c.h.b16 %v177
    %v564 = vunpack.c.l.b16 %v178
    %v565 = vunpack.c.h.b16 %v178
    %v566 = vunpack.c.l.b16 %v179
    %v567 = vunpack.c.h.b16 %v179
    %v568 = vunpack.c.l.b16 %v180
    %v569 = vunpack.c.h.b16 %v180
    %v570 = vunpack.c.l.b16 %v181
    %v571 = vunpack.c.h.b16 %v181
    %v572 = vunpack.c.l.b16 %v182
    %v573 = vunpack.c.h.b16 %v182
    %v574 = vunpack.c.l.b16 %v183
    %v575 = vunpack.c.h.b16 %v183
    %v576 = vunpack.c.l.b16 %v184
    %v577 = vunpack.c.h.b16 %v184
    %v578 = vunpack.c.l.b16 %v185
    %v579 = vunpack.c.h.b16 %v185
    %v580 = vpack.c.b16 %v332, %v324
    %v581 = vpack.c.b16 %v333, %v325
    %v582 = vpack.c.b16 %v334, %v326
    %v583 = vpack.c.b16 %v335, %v327
    %v584 = vpack.c.b16 %v336, %v328
    %v585 = vpack.c.b16 %v337, %v329
    %v586 = vpack.c.b16 %v338, %v330
    %v587 = vpack.c.b16 %v339, %v331
    %v588 = vpack.c.b16 %v348, %v340
    %v589 = vpack.c.b16 %v349, %v341
    %v590 = vpack.c.b16 %v350, %v342
    %v591 = vpack.c.b16 %v351, %v343
    %v592 = vpack.c.b16 %v352, %v344
    %v593 = vpack.c.b16 %v353, %v345
    %v594 = vpack.c.b16 %v354, %v346
    %v595 = vpack.c.b16 %v355, %v347
    %v596 = vpack.c.b16 %v364, %v356
    %v597 = vpack.c.b16 %v365, %v357
    %v598 = vpack.c.b16 %v366, %v358
    %v599 = vpack.c.b16 %v367, %v359
    %v600 = vpack.c.b16 %v368, %v360
    %v601 = vpack.c.b16 %v369, %v361
    %v602 = vpack.c.b16 %v370, %v362
    %v603 = vpack.c.b16 %v371, %v363
    %v604 = vpack.c.b16 %v380, %v372
    %v605 = vpack.c.b16 %v381, %v373
    %v606 = vpack.c.b16 %v382, %v374
    %v607 = vpack.c.b16 %v383, %v375
    %v608 = vpack.c.b16 %v384, %v376
    %v609 = vpack.c.b16 %v385, %v377
    %v610 = vpack.c.b16 %v386, %v378
    %v611 = vpack.c.b16 %v387, %v379
    %v612 = vpack.c.b16 %v396, %v388
    %v613 = vpack.c.b16 %v397, %v389
    %v614 = vpack.c.b16 %v398, %v390
    %v615 = vpack.c.b16 %v399, %v391
    %v616 = vpack.c.b16 %v400, %v392
    %v617 = vpack.c.b16 %v401, %v393
    %v618 = vpack.c.b16 %v402, %v394
    %v619 = vpack.c.b16 %v403, %v395
    %v620 = vpack.c.b16 %v412, %v404
    %v621 = vpack.c.b16 %v413, %v405
    %v622 = vpack.c.b16 %v414, %v406
    %v623 = vpack.c.b16 %v415, %v407
    %v624 = vpack.c.b16 %v416, %v408
    %v625 = vpack.c.b16 %v417, %v409
    %v626 = vpack.c.b16 %v418, %v410
    %v627 = vpack.c.b16 %v419, %v411
    %v628 = vpack.c.b16 %v428, %v420
    %v629 = vpack.c.b16 %v429, %v421
    %v630 = vpack.c.b16 %v430, %v422
    %v631 = vpack.c.b16 %v431, %v423
    %v632 = vpack.c.b16 %v432, %v424
    %v633 = vpack.c.b16 %v433, %v425
    %v634 = vpack.c.b16 %v434, %v426
    %v635 = vpack.c.b16 %v435, %v427
    %v636 = vpack.c.b16 %v444, %v436
    %v637 = vpack.c.b16 %v445, %v437
    %v638 = vpack.c.b16 %v446, %v438
    %v639 = vpack.c.b16 %v447, %v439
    %v640 = vpack.c.b16 %v448, %v440
    %v641 = vpack.c.b16 %v449, %v441
    %v642 = vpack.c.b16 %v450, %v442
    %v643 = vpack.c.b16 %v451, %v443
    %v644 = vpack.c.b16 %v460, %v452
    %v645 = vpack.c.b16 %v461, %v453
    %v646 = vpack.c.b16 %v462, %v454
    %v647 = vpack.c.b16 %v463, %v455
    %v648 = vpack.c.b16 %v464, %v456
    %v649 = vpack.c.b16 %v465, %v457
    %v650 = vpack.c.b16 %v466, %v458
    %v651 = vpack.c.b16 %v467, %v459
    %v652 = vpack.c.b16 %v476, %v468
    %v653 = vpack.c.b16 %v477, %v469
    %v654 = vpack.c.b16 %v478, %v470
    %v655 = vpack.c.b16 %v479, %v471
    %v656 = vpack.c.b16 %v480, %v472
    %v657 = vpack.c.b16 %v481, %v473
    %v658 = vpack.c.b16 %v482, %v474
    %v659 = vpack.c.b16 %v483, %v475
    %v660 = vpack.c.b16 %v492, %v484
    %v661 = vpack.c.b16 %v493, %v485
    %v662 = vpack.c.b16 %v494, %v486
    %v663 = vpack.c.b16 %v495, %v487
    %v664 = vpack.c.b16 %v496, %v488
    %v665 = vpack.c.b16 %v497, %v489
    %v666 = vpack.c.b16 %v498, %v490
    %v667 = vpack.c.b16 %v499, %v491
    %v668 = vpack.c.b16 %v508, %v500
    %v669 = vpack.c.b16 %v509, %v501
    %v670 = vpack.c.b16 %v510, %v502
    %v671 = vpack.c.b16 %v511, %v503
    %v672 = vpack.c.b16 %v512, %v504
    %v673 = vpack.c.b16 %v513, %v505
    %v674 = vpack.c.b16 %v514, %v506
    %v675 = vpack.c.b16 %v515, %v507
    %v676 = vpack.c.b16 %v524, %v516
    %v677 = vpack.c.b16 %v525, %v517
    %v678 = vpack.c.b16 %v526, %v518
    %v679 = vpack.c.b16 %v527, %v519
    %v680 = vpack.c.b16 %v528, %v520
    %v681 = vpack.c.b16 %v529, %v521
    %v682 = vpack.c.b16 %v530, %v522
    %v683 = vpack.c.b16 %v531, %v523
    %v684 = vpack.c.b16 %v540, %v532
    %v685 = vpack.c.b16 %v541, %v533
    %v686 = vpack.c.b16 %v542, %v534
    %v687 = vpack.c.b16 %v543, %v535
    %v688 = vpack.c.b16 %v544, %v536
    %v689 = vpack.c.b16 %v545, %v537
    %v690 = vpack.c.b16 %v546, %v538
    %v691 = vpack.c.b16 %v547, %v539
    %v692 = vpack.c.b16 %v556, %v548
    %v693 = vpack.c.b16 %v557, %v549
    %v694 = vpack.c.b16 %v558, %v550
    %v695 = vpack.c.b16 %v559, %v551
    %v696 = vpack.c.b16 %v560, %v552
    %v697 = vpack.c.b16 %v561, %v553
    %v698 = vpack.c.b16 %v562, %v554
    %v699 = vpack.c.b16 %v563, %v555
    %v700 = vpack.c.b16 %v572, %v564
    %v701 = vpack.c.b16 %v573, %v565
    %v702 = vpack.c.b16 %v574, %v566
    %v703 = vpack.c.b16 %v575, %v567
    %v704 = vpack.c.b16 %v576, %v568
    %v705 = vpack.c.b16 %v577, %v569
    %v706 = vpack.c.b16 %v578, %v570
    %v707 = vpack.c.b16 %v579, %v571
    %836 = vmatprep.subr.bf16.mxu0 %v581
    %837 = vmatpush1.bf16.msra.mxu0 %v580
    %838 = vmatprep.subr.bf16.mxu0 %v589
    %839 = vmatpush1.bf16.msra.mxu0 %v588
    %840 = vmatprep.subr.bf16.mxu0 %v597
    %841 = vmatpush1.bf16.msra.mxu0 %v596
    %842 = vmatprep.subr.bf16.mxu0 %v605
    %843 = vmatpush1.bf16.msra.mxu0 %v604
    %844 = vmatprep.subr.bf16.mxu0 %v613
    %845 = vmatpush1.bf16.msra.mxu0 %v612
    %846 = vmatprep.subr.bf16.mxu0 %v621
    %847 = vmatpush1.bf16.msra.mxu0 %v620
    %848 = vmatprep.subr.bf16.mxu0 %v629
    %849 = vmatpush1.bf16.msra.mxu0 %v628
    %850 = vmatprep.subr.bf16.mxu0 %v637
    %851 = vmatpush1.bf16.msra.mxu0 %v636
    %852 = vmatprep.subr.bf16.mxu0 %v645
    %853 = vmatpush1.bf16.msra.mxu0 %v644
    %854 = vmatprep.subr.bf16.mxu0 %v653
    %855 = vmatpush1.bf16.msra.mxu0 %v652
    %856 = vmatprep.subr.bf16.mxu0 %v661
    %857 = vmatpush1.bf16.msra.mxu0 %v660
    %858 = vmatprep.subr.bf16.mxu0 %v669
    %859 = vmatpush1.bf16.msra.mxu0 %v668
    %860 = vmatprep.subr.bf16.mxu0 %v677
    %861 = vmatpush1.bf16.msra.mxu0 %v676
    %862 = vmatprep.subr.bf16.mxu0 %v685
    %863 = vmatpush1.bf16.msra.mxu0 %v684
    %864 = vmatprep.subr.bf16.mxu0 %v693
    %865 = vmatpush1.bf16.msra.mxu0 %v692
    %866 = vmatprep.subr.bf16.mxu0 %v701
    %867 = vmatpush1.bf16.msra.mxu0 %v700
    %868 = vmatprep.mubr.bf16.mxu0 %v193
    %869 = vmatmul.mubr.bf16.gmra.mrb[0].mxu0 %v192
    %v870 = vpop.f32.mrb[0].mxu0
    %v871 = vadd.f32 0.0, %v870
    %v872 = vpop.f32.mrb[0].mxu0
    %v873 = vadd.f32 0.0, %v872
    %v874 = vpop.f32.mrb[0].mxu0
    %v875 = vadd.f32 0.0, %v874
    %v876 = vpop.f32.mrb[0].mxu0
    %v877 = vadd.f32 0.0, %v876
    %878 = vdwg.mxu0
    %879 = vmatprep.subr.bf16.mxu0 %v583
    %880 = vmatpush1.bf16.msra.mxu0 %v582
    %881 = vmatprep.subr.bf16.mxu0 %v591
    %882 = vmatpush1.bf16.msra.mxu0 %v590
    %883 = vmatprep.subr.bf16.mxu0 %v599
    %884 = vmatpush1.bf16.msra.mxu0 %v598
    %885 = vmatprep.subr.bf16.mxu0 %v607
    %886 = vmatpush1.bf16.msra.mxu0 %v606
    %887 = vmatprep.subr.bf16.mxu0 %v615
    %888 = vmatpush1.bf16.msra.mxu0 %v614
    %889 = vmatprep.subr.bf16.mxu0 %v623
    %890 = vmatpush1.bf16.msra.mxu0 %v622
    %891 = vmatprep.subr.bf16.mxu0 %v631
    %892 = vmatpush1.bf16.msra.mxu0 %v630
    %893 = vmatprep.subr.bf16.mxu0 %v639
    %894 = vmatpush1.bf16.msra.mxu0 %v638
    %895 = vmatprep.subr.bf16.mxu0 %v647
    %896 = vmatpush1.bf16.msra.mxu0 %v646
    %897 = vmatprep.subr.bf16.mxu0 %v655
    %898 = vmatpush1.bf16.msra.mxu0 %v654
    %899 = vmatprep.subr.bf16.mxu0 %v663
    %900 = vmatpush1.bf16.msra.mxu0 %v662
    %901 = vmatprep.subr.bf16.mxu0 %v671
    %902 = vmatpush1.bf16.msra.mxu0 %v670
    %903 = vmatprep.subr.bf16.mxu0 %v679
    %904 = vmatpush1.bf16.msra.mxu0 %v678
    %905 = vmatprep.subr.bf16.mxu0 %v687
    %906 = vmatpush1.bf16.msra.mxu0 %v686
    %907 = vmatprep.subr.bf16.mxu0 %v695
    %908 = vmatpush1.bf16.msra.mxu0 %v694
    %909 = vmatprep.subr.bf16.mxu0 %v703
    %910 = vmatpush1.bf16.msra.mxu0 %v702
    %911 = vmatprep.mubr.bf16.mxu0 %v193
    %912 = vmatmul.mubr.bf16.gmra.mrb[0].mxu0 %v192
    %v913 = vpop.f32.mrb[0].mxu0
    %v914 = vadd.f32 0.0, %v913
    %v915 = vpop.f32.mrb[0].mxu0
    %v916 = vadd.f32 0.0, %v915
    %v917 = vpop.f32.mrb[0].mxu0
    %v918 = vadd.f32 0.0, %v917
    %v919 = vpop.f32.mrb[0].mxu0
    %v920 = vadd.f32 0.0, %v919
    %921 = vdwg.mxu0
    %922 = vmatprep.subr.bf16.mxu0 %v585
    %923 = vmatpush1.bf16.msra.mxu0 %v584
    %924 = vmatprep.subr.bf16.mxu0 %v593
    %925 = vmatpush1.bf16.msra.mxu0 %v592
    %926 = vmatprep.subr.bf16.mxu0 %v601
    %927 = vmatpush1.bf16.msra.mxu0 %v600
    %928 = vmatprep.subr.bf16.mxu0 %v609
    %929 = vmatpush1.bf16.msra.mxu0 %v608
    %930 = vmatprep.subr.bf16.mxu0 %v617
    %931 = vmatpush1.bf16.msra.mxu0 %v616
    %932 = vmatprep.subr.bf16.mxu0 %v625
    %933 = vmatpush1.bf16.msra.mxu0 %v624
    %934 = vmatprep.subr.bf16.mxu0 %v633
    %935 = vmatpush1.bf16.msra.mxu0 %v632
    %936 = vmatprep.subr.bf16.mxu0 %v641
    %937 = vmatpush1.bf16.msra.mxu0 %v640
    %938 = vmatprep.subr.bf16.mxu0 %v649
    %939 = vmatpush1.bf16.msra.mxu0 %v648
    %940 = vmatprep.subr.bf16.mxu0 %v657
    %941 = vmatpush1.bf16.msra.mxu0 %v656
    %942 = vmatprep.subr.bf16.mxu0 %v665
    %943 = vmatpush1.bf16.msra.mxu0 %v664
    %944 = vmatprep.subr.bf16.mxu0 %v673
    %945 = vmatpush1.bf16.msra.mxu0 %v672
    %946 = vmatprep.subr.bf16.mxu0 %v681
    %947 = vmatpush1.bf16.msra.mxu0 %v680
    %948 = vmatprep.subr.bf16.mxu0 %v689
    %949 = vmatpush1.bf16.msra.mxu0 %v688
    %950 = vmatprep.subr.bf16.mxu0 %v697
    %951 = vmatpush1.bf16.msra.mxu0 %v696
    %952 = vmatprep.subr.bf16.mxu0 %v705
    %953 = vmatpush1.bf16.msra.mxu0 %v704
    %954 = vmatprep.mubr.bf16.mxu0 %v193
    %955 = vmatmul.mubr.bf16.gmra.mrb[0].mxu0 %v192
    %v956 = vpop.f32.mrb[0].mxu0
    %v957 = vadd.f32 0.0, %v956
    %v958 = vpop.f32.mrb[0].mxu0
    %v959 = vadd.f32 0.0, %v958
    %v960 = vpop.f32.mrb[0].mxu0
    %v961 = vadd.f32 0.0, %v960
    %v962 = vpop.f32.mrb[0].mxu0
    %v963 = vadd.f32 0.0, %v962
    %964 = vdwg.mxu0
    %965 = vmatprep.subr.bf16.mxu0 %v587
    %966 = vmatpush1.bf16.msra.mxu0 %v586
    %967 = vmatprep.subr.bf16.mxu0 %v595
    %968 = vmatpush1.bf16.msra.mxu0 %v594
    %969 = vmatprep.subr.bf16.mxu0 %v603
    %970 = vmatpush1.bf16.msra.mxu0 %v602
    %971 = vmatprep.subr.bf16.mxu0 %v611
    %972 = vmatpush1.bf16.msra.mxu0 %v610
    %973 = vmatprep.subr.bf16.mxu0 %v619
    %974 = vmatpush1.bf16.msra.mxu0 %v618
    %975 = vmatprep.subr.bf16.mxu0 %v627
    %976 = vmatpush1.bf16.msra.mxu0 %v626
    %977 = vmatprep.subr.bf16.mxu0 %v635
    %978 = vmatpush1.bf16.msra.mxu0 %v634
    %979 = vmatprep.subr.bf16.mxu0 %v643
    %980 = vmatpush1.bf16.msra.mxu0 %v642
    %981 = vmatprep.subr.bf16.mxu0 %v651
    %982 = vmatpush1.bf16.msra.mxu0 %v650
    %983 = vmatprep.subr.bf16.mxu0 %v659
    %984 = vmatpush1.bf16.msra.mxu0 %v658
    %985 = vmatprep.subr.bf16.mxu0 %v667
    %986 = vmatpush1.bf16.msra.mxu0 %v666
    %987 = vmatprep.subr.bf16.mxu0 %v675
    %988 = vmatpush1.bf16.msra.mxu0 %v674
    %989 = vmatprep.subr.bf16.mxu0 %v683
    %990 = vmatpush1.bf16.msra.mxu0 %v682
    %991 = vmatprep.subr.bf16.mxu0 %v691
    %992 = vmatpush1.bf16.msra.mxu0 %v690
    %993 = vmatprep.subr.bf16.mxu0 %v699
    %994 = vmatpush1.bf16.msra.mxu0 %v698
    %995 = vmatprep.subr.bf16.mxu0 %v707
    %996 = vmatpush1.bf16.msra.mxu0 %v706
    %997 = vmatprep.mubr.bf16.mxu0 %v193
    %998 = vmatmul.mubr.bf16.gmra.mrb[0].mxu0 %v192
    %v999 = vpop.f32.mrb[0].mxu0
    %v1000 = vadd.f32 0.0, %v999
    %v1001 = vpop.f32.mrb[0].mxu0
    %v1002 = vadd.f32 0.0, %v1001
    %v1003 = vpop.f32.mrb[0].mxu0
    %v1004 = vadd.f32 0.0, %v1003
    %v1005 = vpop.f32.mrb[0].mxu0
    %v1006 = vadd.f32 0.0, %v1005
    %1007 = vdwg.mxu0
    %v1008 = vxor.u32 %v871, 2147483648
    %v1009 = vxor.u32 %v873, 2147483648
    %v1010 = vxor.u32 %v914, 2147483648
    %v1011 = vxor.u32 %v916, 2147483648
    %v1012 = vxor.u32 %v875, 2147483648
    %v1013 = vxor.u32 %v877, 2147483648
    %v1014 = vxor.u32 %v918, 2147483648
    %v1015 = vxor.u32 %v920, 2147483648
    %v1016 = vmul.f32 %v1008, 1.442695
    %v1017 = vpow.pop %v1016
    %v1018 = vmul.f32 %v1009, 1.442695
    %v1019 = vpow.pop %v1018
    %v1020 = vmul.f32 %v1010, 1.442695
    %v1021 = vpow.pop %v1020
    %v1022 = vmul.f32 %v1011, 1.442695
    %v1023 = vpow.pop %v1022
    %v1024 = vmul.f32 %v1012, 1.442695
    %v1025 = vpow.pop %v1024
    %v1026 = vmul.f32 %v1013, 1.442695
    %v1027 = vpow.pop %v1026
    %v1028 = vmul.f32 %v1014, 1.442695
    %v1029 = vpow.pop %v1028
    %v1030 = vmul.f32 %v1015, 1.442695
    %v1031 = vpow.pop %v1030
    %v1032 = vadd.f32 %v1017, 1.0
    %v1033 = vadd.f32 %v1019, 1.0
    %v1034 = vadd.f32 %v1021, 1.0
    %v1035 = vadd.f32 %v1023, 1.0
    %v1036 = vadd.f32 %v1025, 1.0
    %v1037 = vadd.f32 %v1027, 1.0
    %v1038 = vadd.f32 %v1029, 1.0
    %v1039 = vadd.f32 %v1031, 1.0
    %v1040 = vrcp.pop %v1032
    %v1041 = vmul.f32 1.0, %v1040
    %v1042 = vrcp.pop %v1033
    %v1043 = vmul.f32 1.0, %v1042
    %v1044 = vrcp.pop %v1034
    %v1045 = vmul.f32 1.0, %v1044
    %v1046 = vrcp.pop %v1035
    %v1047 = vmul.f32 1.0, %v1046
    %v1048 = vrcp.pop %v1036
    %v1049 = vmul.f32 1.0, %v1048
    %v1050 = vrcp.pop %v1037
    %v1051 = vmul.f32 1.0, %v1050
    %v1052 = vrcp.pop %v1038
    %v1053 = vmul.f32 1.0, %v1052
    %v1054 = vrcp.pop %v1039
    %v1055 = vmul.f32 1.0, %v1054
    %v1056 = vmul.f32 %v871, %v1041
    %v1057 = vmul.f32 %v873, %v1043
    %v1058 = vmul.f32 %v914, %v1045
    %v1059 = vmul.f32 %v916, %v1047
    %v1060 = vmul.f32 %v875, %v1049
    %v1061 = vmul.f32 %v877, %v1051
    %v1062 = vmul.f32 %v918, %v1053
    %v1063 = vmul.f32 %v920, %v1055
    %v1064 = vmul.f32 %v1056, %v957
    %v1065 = vmul.f32 %v1057, %v959
    %v1066 = vmul.f32 %v1058, %v1000
    %v1067 = vmul.f32 %v1059, %v1002
    %v1068 = vmul.f32 %v1060, %v961
    %v1069 = vmul.f32 %v1061, %v963
    %v1070 = vmul.f32 %v1062, %v1004
    %v1071 = vmul.f32 %v1063, %v1006
    %v1072 = vpack.c.bf16 %v1068, %v1064
    %v1073 = vpack.c.bf16 %v1069, %v1065
    %v1074 = vpack.c.bf16 %v1070, %v1066
    %v1075 = vpack.c.bf16 %v1071, %v1067
    %v1076 = vld [vmem:[#allocation7] sm:$0xff]
    %v1077 = vld [vmem:[#allocation7 + $0x8] sm:$0xff]
    %v1078 = vld [vmem:[#allocation7 + $0x10] sm:$0xff]
    %v1079 = vld [vmem:[#allocation7 + $0x18] sm:$0xff]
    %v1080 = vld [vmem:[#allocation7 + $0x20] sm:$0xff]
    %v1081 = vld [vmem:[#allocation7 + $0x28] sm:$0xff]
    %v1082 = vld [vmem:[#allocation7 + $0x30] sm:$0xff]
    %v1083 = vld [vmem:[#allocation7 + $0x38] sm:$0xff]
    %v1084 = vld [vmem:[#allocation7 + $0x40] sm:$0xff]
    %v1085 = vld [vmem:[#allocation7 + $0x48] sm:$0xff]
    %v1086 = vld [vmem:[#allocation7 + $0x50] sm:$0xff]
    %v1087 = vld [vmem:[#allocation7 + $0x58] sm:$0xff]
    %v1088 = vld [vmem:[#allocation7 + $0x60] sm:$0xff]
    %v1089 = vld [vmem:[#allocation7 + $0x68] sm:$0xff]
    %v1090 = vld [vmem:[#allocation7 + $0x70] sm:$0xff]
    %v1091 = vld [vmem:[#allocation7 + $0x78] sm:$0xff]
    %v1092 = vld [vmem:[#allocation7 + $0x80] sm:$0xff]
    %v1093 = vld [vmem:[#allocation7 + $0x88] sm:$0xff]
    %v1094 = vld [vmem:[#allocation7 + $0x90] sm:$0xff]
    %v1095 = vld [vmem:[#allocation7 + $0x98] sm:$0xff]
    %v1096 = vld [vmem:[#allocation7 + $0xa0] sm:$0xff]
    %v1097 = vld [vmem:[#allocation7 + $0xa8] sm:$0xff]
    %v1098 = vld [vmem:[#allocation7 + $0xb0] sm:$0xff]
    %v1099 = vld [vmem:[#allocation7 + $0xb8] sm:$0xff]
    %v1100 = vld [vmem:[#allocation7 + $0xc0] sm:$0xff]
    %v1101 = vld [vmem:[#allocation7 + $0xc8] sm:$0xff]
    %v1102 = vld [vmem:[#allocation7 + $0xd0] sm:$0xff]
    %v1103 = vld [vmem:[#allocation7 + $0xd8] sm:$0xff]
    %v1104 = vld [vmem:[#allocation7 + $0xe0] sm:$0xff]
    %v1105 = vld [vmem:[#allocation7 + $0xe8] sm:$0xff]
    %v1106 = vld [vmem:[#allocation7 + $0xf0] sm:$0xff]
    %v1107 = vld [vmem:[#allocation7 + $0xf8] sm:$0xff]
    %v1108 = vld [vmem:[#allocation7 + $0x100] sm:$0xff]
    %v1109 = vld [vmem:[#allocation7 + $0x108] sm:$0xff]
    %v1110 = vld [vmem:[#allocation7 + $0x110] sm:$0xff]
    %v1111 = vld [vmem:[#allocation7 + $0x118] sm:$0xff]
    %v1112 = vld [vmem:[#allocation7 + $0x120] sm:$0xff]
    %v1113 = vld [vmem:[#allocation7 + $0x128] sm:$0xff]
    %v1114 = vld [vmem:[#allocation7 + $0x130] sm:$0xff]
    %v1115 = vld [vmem:[#allocation7 + $0x138] sm:$0xff]
    %v1116 = vld [vmem:[#allocation7 + $0x140] sm:$0xff]
    %v1117 = vld [vmem:[#allocation7 + $0x148] sm:$0xff]
    %v1118 = vld [vmem:[#allocation7 + $0x150] sm:$0xff]
    %v1119 = vld [vmem:[#allocation7 + $0x158] sm:$0xff]
    %v1120 = vld [vmem:[#allocation7 + $0x160] sm:$0xff]
    %v1121 = vld [vmem:[#allocation7 + $0x168] sm:$0xff]
    %v1122 = vld [vmem:[#allocation7 + $0x170] sm:$0xff]
    %v1123 = vld [vmem:[#allocation7 + $0x178] sm:$0xff]
    %v1124 = vld [vmem:[#allocation7 + $0x180] sm:$0xff]
    %v1125 = vld [vmem:[#allocation7 + $0x188] sm:$0xff]
    %v1126 = vld [vmem:[#allocation7 + $0x190] sm:$0xff]
    %v1127 = vld [vmem:[#allocation7 + $0x198] sm:$0xff]
    %v1128 = vld [vmem:[#allocation7 + $0x1a0] sm:$0xff]
    %v1129 = vld [vmem:[#allocation7 + $0x1a8] sm:$0xff]
    %v1130 = vld [vmem:[#allocation7 + $0x1b0] sm:$0xff]
    %v1131 = vld [vmem:[#allocation7 + $0x1b8] sm:$0xff]
    %v1132 = vld [vmem:[#allocation7 + $0x1c0] sm:$0xff]
    %v1133 = vld [vmem:[#allocation7 + $0x1c8] sm:$0xff]
    %v1134 = vld [vmem:[#allocation7 + $0x1d0] sm:$0xff]
    %v1135 = vld [vmem:[#allocation7 + $0x1d8] sm:$0xff]
    %v1136 = vld [vmem:[#allocation7 + $0x1e0] sm:$0xff]
    %v1137 = vld [vmem:[#allocation7 + $0x1e8] sm:$0xff]
    %v1138 = vld [vmem:[#allocation7 + $0x1f0] sm:$0xff]
    %v1139 = vld [vmem:[#allocation7 + $0x1f8] sm:$0xff]
    %v1204 = vunpack.c.l.b16 %v1076
    %v1205 = vunpack.c.h.b16 %v1076
    %v1206 = vunpack.c.l.b16 %v1077
    %v1207 = vunpack.c.h.b16 %v1077
    %v1208 = vunpack.c.l.b16 %v1078
    %v1209 = vunpack.c.h.b16 %v1078
    %v1210 = vunpack.c.l.b16 %v1079
    %v1211 = vunpack.c.h.b16 %v1079
    %v1212 = vunpack.c.l.b16 %v1080
    %v1213 = vunpack.c.h.b16 %v1080
    %v1214 = vunpack.c.l.b16 %v1081
    %v1215 = vunpack.c.h.b16 %v1081
    %v1216 = vunpack.c.l.b16 %v1082
    %v1217 = vunpack.c.h.b16 %v1082
    %v1218 = vunpack.c.l.b16 %v1083
    %v1219 = vunpack.c.h.b16 %v1083
    %v1220 = vunpack.c.l.b16 %v1084
    %v1221 = vunpack.c.h.b16 %v1084
    %v1222 = vunpack.c.l.b16 %v1085
    %v1223 = vunpack.c.h.b16 %v1085
    %v1224 = vunpack.c.l.b16 %v1086
    %v1225 = vunpack.c.h.b16 %v1086
    %v1226 = vunpack.c.l.b16 %v1087
    %v1227 = vunpack.c.h.b16 %v1087
    %v1228 = vunpack.c.l.b16 %v1088
    %v1229 = vunpack.c.h.b16 %v1088
    %v1230 = vunpack.c.l.b16 %v1089
    %v1231 = vunpack.c.h.b16 %v1089
    %v1232 = vunpack.c.l.b16 %v1090
    %v1233 = vunpack.c.h.b16 %v1090
    %v1234 = vunpack.c.l.b16 %v1091
    %v1235 = vunpack.c.h.b16 %v1091
    %v1236 = vunpack.c.l.b16 %v1092
    %v1237 = vunpack.c.h.b16 %v1092
    %v1238 = vunpack.c.l.b16 %v1093
    %v1239 = vunpack.c.h.b16 %v1093
    %v1240 = vunpack.c.l.b16 %v1094
    %v1241 = vunpack.c.h.b16 %v1094
    %v1242 = vunpack.c.l.b16 %v1095
    %v1243 = vunpack.c.h.b16 %v1095
    %v1244 = vunpack.c.l.b16 %v1096
    %v1245 = vunpack.c.h.b16 %v1096
    %v1246 = vunpack.c.l.b16 %v1097
    %v1247 = vunpack.c.h.b16 %v1097
    %v1248 = vunpack.c.l.b16 %v1098
    %v1249 = vunpack.c.h.b16 %v1098
    %v1250 = vunpack.c.l.b16 %v1099
    %v1251 = vunpack.c.h.b16 %v1099
    %v1252 = vunpack.c.l.b16 %v1100
    %v1253 = vunpack.c.h.b16 %v1100
    %v1254 = vunpack.c.l.b16 %v1101
    %v1255 = vunpack.c.h.b16 %v1101
    %v1256 = vunpack.c.l.b16 %v1102
    %v1257 = vunpack.c.h.b16 %v1102
    %v1258 = vunpack.c.l.b16 %v1103
    %v1259 = vunpack.c.h.b16 %v1103
    %v1260 = vunpack.c.l.b16 %v1104
    %v1261 = vunpack.c.h.b16 %v1104
    %v1262 = vunpack.c.l.b16 %v1105
    %v1263 = vunpack.c.h.b16 %v1105
    %v1264 = vunpack.c.l.b16 %v1106
    %v1265 = vunpack.c.h.b16 %v1106
    %v1266 = vunpack.c.l.b16 %v1107
    %v1267 = vunpack.c.h.b16 %v1107
    %v1268 = vunpack.c.l.b16 %v1108
    %v1269 = vunpack.c.h.b16 %v1108
    %v1270 = vunpack.c.l.b16 %v1109
    %v1271 = vunpack.c.h.b16 %v1109
    %v1272 = vunpack.c.l.b16 %v1110
    %v1273 = vunpack.c.h.b16 %v1110
    %v1274 = vunpack.c.l.b16 %v1111
    %v1275 = vunpack.c.h.b16 %v1111
    %v1276 = vunpack.c.l.b16 %v1112
    %v1277 = vunpack.c.h.b16 %v1112
    %v1278 = vunpack.c.l.b16 %v1113
    %v1279 = vunpack.c.h.b16 %v1113
    %v1280 = vunpack.c.l.b16 %v1114
    %v1281 = vunpack.c.h.b16 %v1114
    %v1282 = vunpack.c.l.b16 %v1115
    %v1283 = vunpack.c.h.b16 %v1115
    %v1284 = vunpack.c.l.b16 %v1116
    %v1285 = vunpack.c.h.b16 %v1116
    %v1286 = vunpack.c.l.b16 %v1117
    %v1287 = vunpack.c.h.b16 %v1117
    %v1288 = vunpack.c.l.b16 %v1118
    %v1289 = vunpack.c.h.b16 %v1118
    %v1290 = vunpack.c.l.b16 %v1119
    %v1291 = vunpack.c.h.b16 %v1119
    %v1292 = vunpack.c.l.b16 %v1120
    %v1293 = vunpack.c.h.b16 %v1120
    %v1294 = vunpack.c.l.b16 %v1121
    %v1295 = vunpack.c.h.b16 %v1121
    %v1296 = vunpack.c.l.b16 %v1122
    %v1297 = vunpack.c.h.b16 %v1122
    %v1298 = vunpack.c.l.b16 %v1123
    %v1299 = vunpack.c.h.b16 %v1123
    %v1300 = vunpack.c.l.b16 %v1124
    %v1301 = vunpack.c.h.b16 %v1124
    %v1302 = vunpack.c.l.b16 %v1125
    %v1303 = vunpack.c.h.b16 %v1125
    %v1304 = vunpack.c.l.b16 %v1126
    %v1305 = vunpack.c.h.b16 %v1126
    %v1306 = vunpack.c.l.b16 %v1127
    %v1307 = vunpack.c.h.b16 %v1127
    %v1308 = vunpack.c.l.b16 %v1128
    %v1309 = vunpack.c.h.b16 %v1128
    %v1310 = vunpack.c.l.b16 %v1129
    %v1311 = vunpack.c.h.b16 %v1129
    %v1312 = vunpack.c.l.b16 %v1130
    %v1313 = vunpack.c.h.b16 %v1130
    %v1314 = vunpack.c.l.b16 %v1131
    %v1315 = vunpack.c.h.b16 %v1131
    %v1316 = vunpack.c.l.b16 %v1132
    %v1317 = vunpack.c.h.b16 %v1132
    %v1318 = vunpack.c.l.b16 %v1133
    %v1319 = vunpack.c.h.b16 %v1133
    %v1320 = vunpack.c.l.b16 %v1134
    %v1321 = vunpack.c.h.b16 %v1134
    %v1322 = vunpack.c.l.b16 %v1135
    %v1323 = vunpack.c.h.b16 %v1135
    %v1324 = vunpack.c.l.b16 %v1136
    %v1325 = vunpack.c.h.b16 %v1136
    %v1326 = vunpack.c.l.b16 %v1137
    %v1327 = vunpack.c.h.b16 %v1137
    %v1328 = vunpack.c.l.b16 %v1138
    %v1329 = vunpack.c.h.b16 %v1138
    %v1330 = vunpack.c.l.b16 %v1139
    %v1331 = vunpack.c.h.b16 %v1139
    %v1332 = vpack.c.b16 %v1206, %v1204
    %v1333 = vpack.c.b16 %v1207, %v1205
    %v1334 = vpack.c.b16 %v1210, %v1208
    %v1335 = vpack.c.b16 %v1211, %v1209
    %v1336 = vpack.c.b16 %v1214, %v1212
    %v1337 = vpack.c.b16 %v1215, %v1213
    %v1338 = vpack.c.b16 %v1218, %v1216
    %v1339 = vpack.c.b16 %v1219, %v1217
    %v1340 = vpack.c.b16 %v1222, %v1220
    %v1341 = vpack.c.b16 %v1223, %v1221
    %v1342 = vpack.c.b16 %v1226, %v1224
    %v1343 = vpack.c.b16 %v1227, %v1225
    %v1344 = vpack.c.b16 %v1230, %v1228
    %v1345 = vpack.c.b16 %v1231, %v1229
    %v1346 = vpack.c.b16 %v1234, %v1232
    %v1347 = vpack.c.b16 %v1235, %v1233
    %v1348 = vpack.c.b16 %v1238, %v1236
    %v1349 = vpack.c.b16 %v1239, %v1237
    %v1350 = vpack.c.b16 %v1242, %v1240
    %v1351 = vpack.c.b16 %v1243, %v1241
    %v1352 = vpack.c.b16 %v1246, %v1244
    %v1353 = vpack.c.b16 %v1247, %v1245
    %v1354 = vpack.c.b16 %v1250, %v1248
    %v1355 = vpack.c.b16 %v1251, %v1249
    %v1356 = vpack.c.b16 %v1254, %v1252
    %v1357 = vpack.c.b16 %v1255, %v1253
    %v1358 = vpack.c.b16 %v1258, %v1256
    %v1359 = vpack.c.b16 %v1259, %v1257
    %v1360 = vpack.c.b16 %v1262, %v1260
    %v1361 = vpack.c.b16 %v1263, %v1261
    %v1362 = vpack.c.b16 %v1266, %v1264
    %v1363 = vpack.c.b16 %v1267, %v1265
    %v1364 = vpack.c.b16 %v1270, %v1268
    %v1365 = vpack.c.b16 %v1271, %v1269
    %v1366 = vpack.c.b16 %v1274, %v1272
    %v1367 = vpack.c.b16 %v1275, %v1273
    %v1368 = vpack.c.b16 %v1278, %v1276
    %v1369 = vpack.c.b16 %v1279, %v1277
    %v1370 = vpack.c.b16 %v1282, %v1280
    %v1371 = vpack.c.b16 %v1283, %v1281
    %v1372 = vpack.c.b16 %v1286, %v1284
    %v1373 = vpack.c.b16 %v1287, %v1285
    %v1374 = vpack.c.b16 %v1290, %v1288
    %v1375 = vpack.c.b16 %v1291, %v1289
    %v1376 = vpack.c.b16 %v1294, %v1292
    %v1377 = vpack.c.b16 %v1295, %v1293
    %v1378 = vpack.c.b16 %v1298, %v1296
    %v1379 = vpack.c.b16 %v1299, %v1297
    %v1380 = vpack.c.b16 %v1302, %v1300
    %v1381 = vpack.c.b16 %v1303, %v1301
    %v1382 = vpack.c.b16 %v1306, %v1304
    %v1383 = vpack.c.b16 %v1307, %v1305
    %v1384 = vpack.c.b16 %v1310, %v1308
    %v1385 = vpack.c.b16 %v1311, %v1309
    %v1386 = vpack.c.b16 %v1314, %v1312
    %v1387 = vpack.c.b16 %v1315, %v1313
    %v1388 = vpack.c.b16 %v1318, %v1316
    %v1389 = vpack.c.b16 %v1319, %v1317
    %v1390 = vpack.c.b16 %v1322, %v1320
    %v1391 = vpack.c.b16 %v1323, %v1321
    %v1392 = vpack.c.b16 %v1326, %v1324
    %v1393 = vpack.c.b16 %v1327, %v1325
    %v1394 = vpack.c.b16 %v1330, %v1328
    %v1395 = vpack.c.b16 %v1331, %v1329
    %1460 = vmatprep.subr.bf16.mxu0 %v1333
    %1461 = vmatpush1.bf16.msra.mxu0 %v1332
    %1462 = vmatprep.subr.bf16.mxu0 %v1335
    %1463 = vmatpush1.bf16.msra.mxu0 %v1334
    %1464 = vmatprep.subr.bf16.mxu0 %v1337
    %1465 = vmatpush1.bf16.msra.mxu0 %v1336
    %1466 = vmatprep.subr.bf16.mxu0 %v1339
    %1467 = vmatpush1.bf16.msra.mxu0 %v1338
    %1468 = vmatprep.subr.bf16.mxu0 %v1341
    %1469 = vmatpush1.bf16.msra.mxu0 %v1340
    %1470 = vmatprep.subr.bf16.mxu0 %v1343
    %1471 = vmatpush1.bf16.msra.mxu0 %v1342
    %1472 = vmatprep.subr.bf16.mxu0 %v1345
    %1473 = vmatpush1.bf16.msra.mxu0 %v1344
    %1474 = vmatprep.subr.bf16.mxu0 %v1347
    %1475 = vmatpush1.bf16.msra.mxu0 %v1346
    %1476 = vmatprep.subr.bf16.mxu0 %v1349
    %1477 = vmatpush1.bf16.msra.mxu0 %v1348
    %1478 = vmatprep.subr.bf16.mxu0 %v1351
    %1479 = vmatpush1.bf16.msra.mxu0 %v1350
    %1480 = vmatprep.subr.bf16.mxu0 %v1353
    %1481 = vmatpush1.bf16.msra.mxu0 %v1352
    %1482 = vmatprep.subr.bf16.mxu0 %v1355
    %1483 = vmatpush1.bf16.msra.mxu0 %v1354
    %1484 = vmatprep.subr.bf16.mxu0 %v1357
    %1485 = vmatpush1.bf16.msra.mxu0 %v1356
    %1486 = vmatprep.subr.bf16.mxu0 %v1359
    %1487 = vmatpush1.bf16.msra.mxu0 %v1358
    %1488 = vmatprep.subr.bf16.mxu0 %v1361
    %1489 = vmatpush1.bf16.msra.mxu0 %v1360
    %1490 = vmatprep.subr.bf16.mxu0 %v1363
    %1491 = vmatpush1.bf16.msra.mxu0 %v1362
    %1492 = vmatprep.mubr.bf16.mxu0 %v1073
    %1493 = vmatmul.mubr.bf16.gmra.mrb[0].mxu0 %v1072
    %v1494 = vpop.f32.mrb[0].mxu0
    %v1495 = vadd.f32 0.0, %v1494
    %v1496 = vpop.f32.mrb[0].mxu0
    %v1497 = vadd.f32 0.0, %v1496
    %v1498 = vpop.f32.mrb[0].mxu0
    %v1499 = vadd.f32 0.0, %v1498
    %v1500 = vpop.f32.mrb[0].mxu0
    %v1501 = vadd.f32 0.0, %v1500
    %1502 = vdwg.mxu0
    %1503 = vmatprep.subr.bf16.mxu0 %v1365
    %1504 = vmatpush1.bf16.msra.mxu0 %v1364
    %1505 = vmatprep.subr.bf16.mxu0 %v1367
    %1506 = vmatpush1.bf16.msra.mxu0 %v1366
    %1507 = vmatprep.subr.bf16.mxu0 %v1369
    %1508 = vmatpush1.bf16.msra.mxu0 %v1368
    %1509 = vmatprep.subr.bf16.mxu0 %v1371
    %1510 = vmatpush1.bf16.msra.mxu0 %v1370
    %1511 = vmatprep.subr.bf16.mxu0 %v1373
    %1512 = vmatpush1.bf16.msra.mxu0 %v1372
    %1513 = vmatprep.subr.bf16.mxu0 %v1375
    %1514 = vmatpush1.bf16.msra.mxu0 %v1374
    %1515 = vmatprep.subr.bf16.mxu0 %v1377
    %1516 = vmatpush1.bf16.msra.mxu0 %v1376
    %1517 = vmatprep.subr.bf16.mxu0 %v1379
    %1518 = vmatpush1.bf16.msra.mxu0 %v1378
    %1519 = vmatprep.subr.bf16.mxu0 %v1381
    %1520 = vmatpush1.bf16.msra.mxu0 %v1380
    %1521 = vmatprep.subr.bf16.mxu0 %v1383
    %1522 = vmatpush1.bf16.msra.mxu0 %v1382
    %1523 = vmatprep.subr.bf16.mxu0 %v1385
    %1524 = vmatpush1.bf16.msra.mxu0 %v1384
    %1525 = vmatprep.subr.bf16.mxu0 %v1387
    %1526 = vmatpush1.bf16.msra.mxu0 %v1386
    %1527 = vmatprep.subr.bf16.mxu0 %v1389
    %1528 = vmatpush1.bf16.msra.mxu0 %v1388
    %1529 = vmatprep.subr.bf16.mxu0 %v1391
    %1530 = vmatpush1.bf16.msra.mxu0 %v1390
    %1531 = vmatprep.subr.bf16.mxu0 %v1393
    %1532 = vmatpush1.bf16.msra.mxu0 %v1392
    %1533 = vmatprep.subr.bf16.mxu0 %v1395
    %1534 = vmatpush1.bf16.msra.mxu0 %v1394
    %1535 = vmatprep.mubr.bf16.mxu0 %v1075
    %1536 = vmatmul.mubr.bf16.gmra.mrb[0].mxu0 %v1074
    %v1537 = vpop.f32.mrb[0].mxu0
    %v1538 = vadd.f32 %v1495, %v1537
    %v1539 = vpop.f32.mrb[0].mxu0
    %v1540 = vadd.f32 %v1497, %v1539
    %v1541 = vpop.f32.mrb[0].mxu0
    %v1542 = vadd.f32 %v1499, %v1541
    %v1543 = vpop.f32.mrb[0].mxu0
    %v1544 = vadd.f32 %v1501, %v1543
    %1545 = vdwg.mxu0
    %1546 = vst [vmem:[#allocation8] sm:$0xff] %v1538
    %1547 = vst [vmem:[#allocation8 + $0x8] sm:$0xff] %v1540
    %1548 = vst [vmem:[#allocation8 + $0x10] sm:$0xff] %v1542
    %1549 = vst [vmem:[#allocation8 + $0x18] sm:$0xff] %v1544
    // Predicated region
    $region26: #{tpu_custom_call.1} parent=1 // pred_check
      _
    $region27: #{tpu_custom_call.1} parent=1 // pred_check_branch
      %1551 = sbr.rel (0) target = $region29
    $region28: #{tpu_custom_call.1} parent=1 // pred_region
      %s1553 = ssub.s32 512, 512
      %1554 = vsyncadd [#allocation4], %s1553
      %s1555 = sshll.u32 [#allocation8], 4
      %s1556 = int_to_ptr.vmem [resolvable:$true] %s1555
      %1561 = dma.vmem_to_hbm [thread:$0]  %s1556, 512, %s3, [#allocation4], 256, 256, 16
    $region29: #{tpu_custom_call.1} parent=1 // pred_fallthru
      _
    // Predicated region
    $region30: #{tpu_custom_call.1} parent=1 // pred_check
      _
    $region31: #{tpu_custom_call.1} parent=1 // pred_check_branch
      %1563 = sbr.rel (0) target = $region33
    $region32: #{tpu_custom_call.1} parent=1 // pred_region
      %1564 = dma.done [#allocation4], 512
    $region33: #{tpu_custom_call.1} parent=1 // pred_fallthru
      _
    %1565 = vsyncpa [#allocation3], 1
    %1566 = vsyncpa [#allocation6], 1
    %1567 = vsyncpa [#allocation4], 1

</llo_original>
